<compile_context>
chip_gen: v5e
topology: v5e:2x2
jax: 0.10.0
libtpu: 0.0.40
codegen_flags: <defaults>
</compile_context>

<pallas_src>
import jax
import jax.numpy as jnp
from jax.experimental import pallas as pl
from jax.experimental.pallas import tpu as pltpu

LANE = 128          # anchors per row (lane axis)
SUBL = 8            # f32 sublane granularity
ROW_ALIGN = 32      # int8 min-tile sublane granularity
MAX_R_TILE = 4096   # rows per grid step (~2.5 MiB/buffer with slim layout)


def _make_kernel(n_anchors, r_tile):
    """Build the kernel closure over static N and the row-tile size."""

    def kernel(d_ref, y_ref, out_ref):
        # d_ref:   (r_tile, 128) f32   — logit0 - logit1 per anchor
        # y_ref:   (r_tile, 128) int8  — labels in {-1, 0, 1} (pad region junk OK)
        # out_ref: (1, 2, 8, 128) f32  — per-tile partial (sum, count) planes
        pid = pl.program_id(0)

        d = d_ref[...]
        y = y_ref[...].astype(jnp.int32)

        # Global anchor index mask: handles both the explicit small pad and
        # any unspecified contents of a partial last block.
        rows = jax.lax.broadcasted_iota(jnp.int32, (r_tile, LANE), 0)
        lanes = jax.lax.broadcasted_iota(jnp.int32, (r_tile, LANE), 1)
        gidx = (rows + pid * r_tile) * LANE + lanes
        valid = (gidx < n_anchors) & (y != -1)

        # 2-class -log_softmax at the true class == softplus(l_other - l_true)
        #   true==1 -> softplus(d),  true==0 -> softplus(-d)
        s = jnp.where(y == 1, d, -d)
        per_anchor = jnp.maximum(s, 0.0) + jnp.log1p(jnp.exp(-jnp.abs(s)))
        per_anchor = jnp.where(valid, per_anchor, 0.0)
        valid_f = valid.astype(jnp.float32)

        # Reduce (r_tile, 128) -> (8, 128): pure cross-vreg VPU adds (the
        # reshape splits the sublane axis on an (8,128) tile boundary).
        out_ref[0, 0] = per_anchor.reshape(r_tile // SUBL, SUBL, LANE).sum(axis=0)
        out_ref[0, 1] = valid_f.reshape(r_tile // SUBL, SUBL, LANE).sum(axis=0)

    return kernel


def rpn_cls_loss(inp, target):
    """inp: (1, N, 2) float logits; target: (1, 1, N) labels in {-1, 0, 1}."""
    n = inp.shape[1]
    r = pl.cdiv(n, LANE)
    r_pad = pl.cdiv(r, ROW_ALIGN) * ROW_ALIGN        # <= 4095 extra anchors
    n_pad = r_pad * LANE
    r_tile = min(MAX_R_TILE, r_pad)
    num_tiles = pl.cdiv(r_pad, r_tile)

    logits = inp[0].astype(jnp.float32)              # (N, 2)
    d = logits[:, 0] - logits[:, 1]                  # (N,) — fuses with producer
    y = target[0, 0].astype(jnp.int8)                # (N,) exact for {-1, 0, 1}

    if n_pad != n:
        # Tiny pad to reshape granularity only; contents are masked in-kernel
        # by the global-index test, so the fill values are don't-care.
        d = jnp.pad(d, (0, n_pad - n))
        y = jnp.pad(y, (0, n_pad - n), constant_values=-1)

    d2 = d.reshape(r_pad, LANE)
    y2 = y.reshape(r_pad, LANE)

    partials = pl.pallas_call(
        _make_kernel(n, r_tile),
        out_shape=jax.ShapeDtypeStruct((num_tiles, 2, SUBL, LANE), jnp.float32),
        grid=(num_tiles,),
        in_specs=[
            pl.BlockSpec((r_tile, LANE), lambda i: (i, 0)),
            pl.BlockSpec((r_tile, LANE), lambda i: (i, 0)),
        ],
        out_specs=pl.BlockSpec((1, 2, SUBL, LANE), lambda i: (i, 0, 0, 0)),
        compiler_params=pltpu.CompilerParams(
            dimension_semantics=("parallel",)),     # megacore-safe: disjoint outputs
        cost_estimate=pl.CostEstimate(
            flops=12 * n_pad,
            transcendentals=2 * n_pad,
            bytes_accessed=5 * n_pad + num_tiles * 2 * SUBL * LANE * 4),
    )(d2, y2)

    total = jnp.sum(partials[:, 0])
    cnt = jnp.sum(partials[:, 1])
    # TODO(synk): PyTorch nll_loss returns NaN when no anchors are kept; we
    # return 0.0 for the empty case (the more sensible convention).
    mean = jnp.where(cnt > 0.0, total / jnp.maximum(cnt, 1.0), 0.0)
    return jnp.clip(mean, 0.0, 10.0)


def _reference(inp, target):
    # Pure-JAX reference of the PyTorch forward (for sanity only).
    y_true = target[0, 0]
    keep = y_true != -1
    logits = inp[0]
    logp = jax.nn.log_softmax(logits, axis=-1)
    lbl = jnp.clip(y_true, 0, 1).astype(jnp.int32)
    nll = -jnp.take_along_axis(logp, lbl[:, None], axis=-1)[:, 0]
    cnt = jnp.sum(keep)
    mean = jnp.where(cnt > 0,
                     jnp.sum(jnp.where(keep, nll, 0.0)) / jnp.maximum(cnt, 1),
                     0.0)
    return jnp.clip(mean, 0.0, 10.0)


if __name__ == "__main__":
    key = jax.random.PRNGKey(0)
    loss_fn = jax.jit(rpn_cls_loss)   # wrapper elementwise/pad passes fuse under jit

    # Case 1: lane-aligned anchor count.
    k1, k2, k3, k4 = jax.random.split(key, 4)
    N1 = 256
    logits1 = jax.random.normal(k1, (1, N1, 2), dtype=jnp.float32)
    labels1 = jax.random.randint(k2, (1, 1, N1), -1, 2).astype(jnp.float32)
    loss1 = loss_fn(logits1, labels1)
    jax.block_until_ready(loss1)
    ref1 = _reference(logits1, labels1)
    assert jnp.allclose(loss1, ref1, atol=1e-5, rtol=1e-5), (loss1, ref1)

    # Case 2: non-multiple-of-128 anchor count (exercises pad + index mask).
    N2 = 200
    logits2 = jax.random.normal(k3, (1, N2, 2), dtype=jnp.float32)
    labels2 = jax.random.randint(k4, (1, 1, N2), -1, 2).astype(jnp.float32)
    loss2 = loss_fn(logits2, labels2)
    jax.block_until_ready(loss2)
    ref2 = _reference(logits2, labels2)
    assert jnp.allclose(loss2, ref2, atol=1e-5, rtol=1e-5), (loss2, ref2)

    print("KERNEL_OK")
</pallas_src>

<mosaic_0001>
module attributes {stable_mosaic.version = 11 : i64} {
  func.func @kernel(%arg0: i32, %arg1: memref<32x128xf32, #tpu.memory_space<vmem>>, %arg2: memref<32x128xi8, #tpu.memory_space<vmem>>, %arg3: memref<1x2x8x128xf32, #tpu.memory_space<vmem>>) attributes {dimension_semantics = [#tpu.dimension_semantics<parallel>], iteration_bounds = array<i64: 1>, scalar_prefetch = 0 : i64, scratch_operands = 0 : i64, tpu.core_type = #tpu.core_type<tc>, window_params = [{transform_indices = @transform_0, window_bounds = array<i64: 32, 128>}, {transform_indices = @transform_1, window_bounds = array<i64: 32, 128>}, {transform_indices = @transform_2, window_bounds = array<i64: 1, 2, 8, 128>}]} {
    %c0 = arith.constant 0 : index
    %c0_0 = arith.constant 0 : index
    %0 = vector.load %arg1[%c0, %c0_0] : memref<32x128xf32, #tpu.memory_space<vmem>>, vector<32x128xf32>
    %c0_1 = arith.constant 0 : index
    %c0_2 = arith.constant 0 : index
    %1 = vector.load %arg2[%c0_1, %c0_2] : memref<32x128xi8, #tpu.memory_space<vmem>>, vector<32x128xi8>
    %2 = arith.extsi %1 : vector<32x128xi8> to vector<32x128xi32>
    %3 = tpu.iota {dimensions = array<i32: 0>} : vector<32x128xi32>
    %4 = tpu.iota {dimensions = array<i32: 1>} : vector<32x128xi32>
    %c32_i32 = arith.constant 32 : i32
    %5 = arith.muli %arg0, %c32_i32 : i32
    %6 = vector.broadcast %5 : i32 to vector<32x128xi32>
    %7 = arith.addi %3, %6 : vector<32x128xi32>
    %c128_i32 = arith.constant 128 : i32
    %8 = vector.broadcast %c128_i32 : i32 to vector<32x128xi32>
    %9 = arith.muli %7, %8 : vector<32x128xi32>
    %10 = arith.addi %9, %4 : vector<32x128xi32>
    %c256_i32 = arith.constant 256 : i32
    %11 = vector.broadcast %c256_i32 : i32 to vector<32x128xi32>
    %12 = arith.cmpi slt, %10, %11 : vector<32x128xi32>
    %c-1_i32 = arith.constant -1 : i32
    %13 = vector.broadcast %c-1_i32 : i32 to vector<32x128xi32>
    %14 = arith.cmpi ne, %2, %13 : vector<32x128xi32>
    %15 = arith.andi %12, %14 : vector<32x128xi1>
    %c1_i32 = arith.constant 1 : i32
    %16 = vector.broadcast %c1_i32 : i32 to vector<32x128xi32>
    %17 = arith.cmpi eq, %2, %16 : vector<32x128xi32>
    %cst = arith.constant 0.000000e+00 : f32
    %18 = vector.broadcast %cst : f32 to vector<32x128xf32>
    %19 = arith.subf %18, %0 : vector<32x128xf32>
    %20 = arith.select %17, %0, %19 : vector<32x128xi1>, vector<32x128xf32>
    %cst_3 = arith.constant 0.000000e+00 : f32
    %21 = vector.broadcast %cst_3 : f32 to vector<32x128xf32>
    %22 = arith.maximumf %20, %21 : vector<32x128xf32>
    %23 = math.absf %20 : vector<32x128xf32>
    %cst_4 = arith.constant 0.000000e+00 : f32
    %24 = vector.broadcast %cst_4 : f32 to vector<32x128xf32>
    %25 = arith.subf %24, %23 : vector<32x128xf32>
    %26 = math.exp %25 : vector<32x128xf32>
    %27 = math.log1p %26 : vector<32x128xf32>
    %28 = arith.addf %22, %27 : vector<32x128xf32>
    %cst_5 = arith.constant 0.000000e+00 : f32
    %29 = vector.broadcast %cst_5 : f32 to vector<32x128xf32>
    %30 = arith.select %15, %28, %29 : vector<32x128xi1>, vector<32x128xf32>
    %31 = arith.extui %15 : vector<32x128xi1> to vector<32x128xi32>
    %32 = arith.sitofp %31 : vector<32x128xi32> to vector<32x128xf32>
    %33 = vector.shape_cast %30 : vector<32x128xf32> to vector<4x8x128xf32>
    %cst_6 = arith.constant dense<0.000000e+00> : vector<8x128xf32>
    %34 = vector.multi_reduction <add>, %33, %cst_6 [0] : vector<4x8x128xf32> to vector<8x128xf32>
    %c0_7 = arith.constant 0 : index
    %c0_8 = arith.constant 0 : index
    %c0_9 = arith.constant 0 : index
    %c0_10 = arith.constant 0 : index
    %35 = vector.load %arg3[%c0_7, %c0_8, %c0_9, %c0_10] : memref<1x2x8x128xf32, #tpu.memory_space<vmem>>, vector<1x1x8x128xf32>
    %36 = vector.shape_cast %35 : vector<1x1x8x128xf32> to vector<8x128xf32>
    %37 = vector.shape_cast %34 : vector<8x128xf32> to vector<1x1x8x128xf32>
    tpu.vector_store %arg3[%c0_7, %c0_8, %c0_9, %c0_10], %37 {strides = array<i32>} : memref<1x2x8x128xf32, #tpu.memory_space<vmem>>, vector<1x1x8x128xf32>,
    %38 = vector.shape_cast %32 : vector<32x128xf32> to vector<4x8x128xf32>
    %cst_11 = arith.constant dense<0.000000e+00> : vector<8x128xf32>
    %39 = vector.multi_reduction <add>, %38, %cst_11 [0] : vector<4x8x128xf32> to vector<8x128xf32>
    %c0_12 = arith.constant 0 : index
    %c1 = arith.constant 1 : index
    %c0_13 = arith.constant 0 : index
    %c0_14 = arith.constant 0 : index
    %40 = vector.load %arg3[%c0_12, %c1, %c0_13, %c0_14] : memref<1x2x8x128xf32, #tpu.memory_space<vmem>>, vector<1x1x8x128xf32>
    %41 = vector.shape_cast %40 : vector<1x1x8x128xf32> to vector<8x128xf32>
    %42 = vector.shape_cast %39 : vector<8x128xf32> to vector<1x1x8x128xf32>
    tpu.vector_store %arg3[%c0_12, %c1, %c0_13, %c0_14], %42 {strides = array<i32>} : memref<1x2x8x128xf32, #tpu.memory_space<vmem>>, vector<1x1x8x128xf32>,
    return
  }
  func.func @transform_0(%arg0: i32) -> (i32, i32) {
    %c0_i32 = arith.constant 0 : i32
    %c0_i32_0 = arith.constant 0 : i32
    return %arg0, %c0_i32 : i32, i32
  }
  func.func @transform_1(%arg0: i32) -> (i32, i32) {
    %c0_i32 = arith.constant 0 : i32
    %c0_i32_0 = arith.constant 0 : i32
    return %arg0, %c0_i32 : i32, i32
  }
  func.func @transform_2(%arg0: i32) -> (i32, i32, i32, i32) {
    %c0_i32 = arith.constant 0 : i32
    %c0_i32_0 = arith.constant 0 : i32
    %c0_i32_1 = arith.constant 0 : i32
    %c0_i32_2 = arith.constant 0 : i32
    return %arg0, %c0_i32, %c0_i32_0, %c0_i32_1 : i32, i32, i32, i32
  }
}

</mosaic_0001>

<llo_original>
// kernel: rpn_cls_loss.1
$region0: #{rpn_cls_loss.1}
  #allocation0 [shape = 'u32[]', space=smem, size = 0x4, offset = 0x4, fixed_abs, tag = 'smem constant byte address 0x4 - core index']
  #allocation1 [shape = 'u32[72,128]{1,0:T(1,128)}', space=vmem, size = 0x9000, scoped, tag = 'internal scratch']
  %s0 = inlined_call_operand.vmem [shape: f32[32,128], index: 0, kind: input, shape index: {}]
  %s1 = inlined_call_operand.vmem [shape: s8[32,128], index: 1, kind: input, shape index: {}]
  %s2 = inlined_call_operand.vmem [shape: f32[1,2,8,128], index: 2, kind: output, shape index: {}]
  %s3 = sld [smem:[#allocation0]]
  $region18: #{rpn_cls_loss.1} parent=0
    _
  %s5 = ssub.s32 1, %s3
  %s6 = scalar_select 0, %s5, %s3
  // Predicated region
  $region2: #{rpn_cls_loss.1} parent=0 // pred_check
    _
  $region3: #{rpn_cls_loss.1} parent=0 // pred_check_branch
    %8 = sbr.rel (0) target = $region5
  $region4: #{rpn_cls_loss.1} parent=0 // pred_region
    _
  $region5: #{rpn_cls_loss.1} parent=0 // pred_fallthru
    _
  // Predicated region
  $region6: #{rpn_cls_loss.1} parent=0 // pred_check
    _
  $region7: #{rpn_cls_loss.1} parent=0 // pred_check_branch
    %10 = sbr.rel (0) target = $region9
  $region8: #{rpn_cls_loss.1} parent=0 // pred_region
    _
  $region9: #{rpn_cls_loss.1} parent=0 // pred_fallthru
    _
  %v11 = vld [vmem:[%s0] sm:$0xff]
  %v12 = vld [vmem:[%s0 + $0x8] sm:$0xff]
  %v13 = vld [vmem:[%s0 + $0x10] sm:$0xff]
  %v14 = vld [vmem:[%s0 + $0x18] sm:$0xff]
  %v15 = vld [vmem:[%s1] sm:$0xff]
  %v16 = vunpack.c.0.s8 %v15
  %v17 = vunpack.c.1.s8 %v15
  %v18 = vunpack.c.2.s8 %v15
  %v19 = vunpack.c.3.s8 %v15
  %v20 = vlaneseq
  %v21 = vshrl.u32 %v20, 7
  %v22 = vadd.s32 %v21, 8
  %v23 = vadd.s32 %v21, 16
  %v24 = vadd.s32 %v21, 24
  %v25 = vlaneseq
  %v26 = vand.u32 %v25, 127
  %s27 = smul.u32 0, 32
  %v28 = vstv %s27
  %v29 = vadd.s32 %v21, %v28
  %v30 = vadd.s32 %v22, %v28
  %v31 = vadd.s32 %v23, %v28
  %v32 = vadd.s32 %v24, %v28
  %v33 = vmul.u32 %v29, 128
  %v34 = vmul.u32 %v30, 128
  %v35 = vmul.u32 %v31, 128
  %v36 = vmul.u32 %v32, 128
  %v37 = vadd.s32 %v33, %v26
  %v38 = vadd.s32 %v34, %v26
  %v39 = vadd.s32 %v35, %v26
  %v40 = vadd.s32 %v36, %v26
  %vm41 = vcmp.lt.s32.totalorder %v37, 256
  %vm42 = vcmp.lt.s32.totalorder %v38, 256
  %vm43 = vcmp.lt.s32.totalorder %v39, 256
  %vm44 = vcmp.lt.s32.totalorder %v40, 256
  %vm45 = vcmp.ne.s32.totalorder %v16, 4294967295
  %vm46 = vcmp.ne.s32.totalorder %v17, 4294967295
  %vm47 = vcmp.ne.s32.totalorder %v18, 4294967295
  %vm48 = vcmp.ne.s32.totalorder %v19, 4294967295
  %vm49 = vmand %vm41, %vm45
  %vm50 = vmand %vm42, %vm46
  %vm51 = vmand %vm43, %vm47
  %vm52 = vmand %vm44, %vm48
  %vm53 = vcmp.eq.s32.totalorder %v16, 1
  %vm54 = vcmp.eq.s32.totalorder %v17, 1
  %vm55 = vcmp.eq.s32.totalorder %v18, 1
  %vm56 = vcmp.eq.s32.totalorder %v19, 1
  %v57 = vsub.f32 0.0, %v11
  %v58 = vsub.f32 0.0, %v12
  %v59 = vsub.f32 0.0, %v13
  %v60 = vsub.f32 0.0, %v14
  %v61 = vsel %vm53, %v11, %v57
  %v62 = vsel %vm54, %v12, %v58
  %v63 = vsel %vm55, %v13, %v59
  %v64 = vsel %vm56, %v14, %v60
  %v65 = vmax.f32 %v61, 0.0
  %v66 = vmax.f32 %v62, 0.0
  %v67 = vmax.f32 %v63, 0.0
  %v68 = vmax.f32 %v64, 0.0
  %v69 = vand.u32 2147483647, %v61
  %v70 = vand.u32 2147483647, %v62
  %v71 = vand.u32 2147483647, %v63
  %v72 = vand.u32 2147483647, %v64
  %v73 = vsub.f32 0.0, %v69
  %v74 = vsub.f32 0.0, %v70
  %v75 = vsub.f32 0.0, %v71
  %v76 = vsub.f32 0.0, %v72
  %v77 = vmul.f32 %v73, 1.442695
  %v78 = vpow.pop %v77
  %v79 = vmul.f32 %v74, 1.442695
  %v80 = vpow.pop %v79
  %v81 = vmul.f32 %v75, 1.442695
  %v82 = vpow.pop %v81
  %v83 = vmul.f32 %v76, 1.442695
  %v84 = vpow.pop %v83
  %v85 = vadd.f32 %v78, 1.0
  %v86 = vlog2.pop %v85
  %v87 = vmul.f32 %v86, 0.6931472
  %v88 = vmul.f32 -0.5, %v78
  %v89 = vadd.f32 %v88, 1.0
  %v90 = vmul.f32 %v89, %v78
  %v91 = vand.u32 2147483647, %v78
  %vm92 = vcmp.lt.f32.partialorder %v91, 0.0004427343
  %v93 = vsel %vm92, %v90, %v87
  %v94 = vadd.f32 %v80, 1.0
  %v95 = vlog2.pop %v94
  %v96 = vmul.f32 %v95, 0.6931472
  %v97 = vmul.f32 -0.5, %v80
  %v98 = vadd.f32 %v97, 1.0
  %v99 = vmul.f32 %v98, %v80
  %v100 = vand.u32 2147483647, %v80
  %vm101 = vcmp.lt.f32.partialorder %v100, 0.0004427343
  %v102 = vsel %vm101, %v99, %v96
  %v103 = vadd.f32 %v82, 1.0
  %v104 = vlog2.pop %v103
  %v105 = vmul.f32 %v104, 0.6931472
  %v106 = vmul.f32 -0.5, %v82
  %v107 = vadd.f32 %v106, 1.0
  %v108 = vmul.f32 %v107, %v82
  %v109 = vand.u32 2147483647, %v82
  %vm110 = vcmp.lt.f32.partialorder %v109, 0.0004427343
  %v111 = vsel %vm110, %v108, %v105
  %v112 = vadd.f32 %v84, 1.0
  %v113 = vlog2.pop %v112
  %v114 = vmul.f32 %v113, 0.6931472
  %v115 = vmul.f32 -0.5, %v84
  %v116 = vadd.f32 %v115, 1.0
  %v117 = vmul.f32 %v116, %v84
  %v118 = vand.u32 2147483647, %v84
  %vm119 = vcmp.lt.f32.partialorder %v118, 0.0004427343
  %v120 = vsel %vm119, %v117, %v114
  %v121 = vadd.f32 %v65, %v93
  %v122 = vadd.f32 %v66, %v102
  %v123 = vadd.f32 %v67, %v111
  %v124 = vadd.f32 %v68, %v120
  %v125 = vsel %vm49, %v121, 0.0
  %v126 = vsel %vm50, %v122, 0.0
  %v127 = vsel %vm51, %v123, 0.0
  %v128 = vsel %vm52, %v124, 0.0
  %v129 = vsel %vm49, 1, 0
  %v130 = vsel %vm50, 1, 0
  %v131 = vsel %vm51, 1, 0
  %v132 = vsel %vm52, 1, 0
  %v133 = vcvt.s32.f32 %v129
  %v134 = vcvt.s32.f32 %v130
  %v135 = vcvt.s32.f32 %v131
  %v136 = vcvt.s32.f32 %v132
  %v137 = vadd.f32 %v125, %v126
  %v138 = vadd.f32 %v137, %v127
  %v139 = vadd.f32 %v138, %v128
  %140 = vst [vmem:[%s2] sm:$0xff] %v139
  %v141 = vadd.f32 %v133, %v134
  %v142 = vadd.f32 %v141, %v135
  %v143 = vadd.f32 %v142, %v136
  %s144 = scalar_lea.vmem %s2, 8
  %145 = vst [vmem:[%s144] sm:$0xff] %v143
  // Predicated region
  $region10: #{rpn_cls_loss.1} parent=0 // pred_check
    _
  $region11: #{rpn_cls_loss.1} parent=0 // pred_check_branch
    %147 = sbr.rel (0) target = $region13
  $region12: #{rpn_cls_loss.1} parent=0 // pred_region
    _
  $region13: #{rpn_cls_loss.1} parent=0 // pred_fallthru
    _
  // Predicated region
  $region14: #{rpn_cls_loss.1} parent=0 // pred_check
    _
  $region15: #{rpn_cls_loss.1} parent=0 // pred_check_branch
    %149 = sbr.rel (0) target = $region17
  $region16: #{rpn_cls_loss.1} parent=0 // pred_region
    _
  $region17: #{rpn_cls_loss.1} parent=0 // pred_fallthru
    _

</llo_original>
